<compile_context>
chip_gen: v5e
topology: v5e:2x2
jax: 0.10.0
libtpu: 0.0.40
codegen_flags: <defaults>
</compile_context>

<pallas_src>
import jax
import jax.numpy as jnp
from jax.experimental import pallas as pl
from jax.experimental.pallas import tpu as pltpu


def _round_up(x, m):
    return ((x + m - 1) // m) * m


def _attention_kernel(x_ref, w1_ref, b1_ref, w2_ref, b2_ref,
                      prob_ref, score_ref, acc_ref):
    # x_ref    : (C_in, TP)    pixel tile, lane-dense (TP % 128 == 0)
    # w1_ref   : (CHUNK, C_in) bf16 conv1 weight chunk with BN folded in
    # b1_ref   : (CHUNK, 1)    f32 conv1 bias chunk with BN folded in
    # w2_ref   : (1, CHUNK)    bf16 conv2 weight chunk
    # b2_ref   : (1, 1)        f32 conv2 bias
    # prob_ref, score_ref: (1, TP) lane-dense outputs
    # acc_ref  : (1, TP) f32   accumulator across hidden chunks
    hc = pl.program_id(2)

    @pl.when(hc == 0)
    def _():
        acc_ref[...] = jnp.zeros_like(acc_ref)

    x = x_ref[...].astype(jnp.bfloat16)                        # (C_in, TP)
    h = jnp.dot(w1_ref[...], x, preferred_element_type=jnp.float32)
    h = jnp.maximum(h + b1_ref[...], 0.0)                      # (CHUNK, TP) f32
    acc_ref[...] += jnp.dot(w2_ref[...], h.astype(jnp.bfloat16),
                            preferred_element_type=jnp.float32)

    @pl.when(hc == pl.num_programs(2) - 1)
    def _():
        s = acc_ref[...] + b2_ref[...]
        score_ref[...] = s.astype(score_ref.dtype)
        # numerically stable softplus: max(s, 0) + log(1 + exp(-|s|)), in f32
        prob = jnp.maximum(s, 0.0) + jnp.log(1.0 + jnp.exp(-jnp.abs(s)))
        prob_ref[...] = prob.astype(prob_ref.dtype)


def _vmem_capacity_bytes(default=64 * 1024 * 1024):
    try:
        cap = getattr(pltpu.get_tpu_info(), "vmem_capacity_bytes", None)
        if cap:
            return int(cap)
    except Exception:
        pass
    return default


def attention_forward(features, w1, b1, gamma, beta, running_mean, running_var,
                      w2, b2, *, eps=1e-5, tile_pixels=None, hidden_chunk=256):
    """features: (B, C_in, H, W) NCHW.
    w1: (C_hid, C_in) [1x1 conv weight squeezed], b1: (C_hid,)
    gamma/beta/running_mean/running_var: (C_hid,)  (BatchNorm2d, eval stats)
    w2: (1, C_hid), b2: (1,)
    Returns (probability, score), each (B, 1, H, W).
    """
    B, C_in, H, W = features.shape
    in_dtype = features.dtype
    dsize = jnp.dtype(in_dtype).itemsize

    w1 = w1.reshape(-1, C_in)
    C_hid = w1.shape[0]
    w2 = w2.reshape(1, C_hid)

    # Fold eval-mode BatchNorm into conv1 (in f32), then cast weights to bf16.
    # TODO(synk): training-mode BatchNorm (batch statistics) is not implemented.
    inv_std = 1.0 / jnp.sqrt(running_var.astype(jnp.float32) + eps)
    scale = gamma.astype(jnp.float32) * inv_std                     # (C_hid,)
    w1_f = w1.astype(jnp.float32) * scale[:, None]                  # (C_hid, C_in)
    b1_f = ((b1.astype(jnp.float32) - running_mean.astype(jnp.float32)) * scale
            + beta.astype(jnp.float32))                             # (C_hid,)

    # Hidden-channel chunking (innermost, "arbitrary" grid axis).
    if C_hid <= hidden_chunk:
        chunk = _round_up(C_hid, 8)
        c_hid_pad = chunk
    else:
        chunk = _round_up(hidden_chunk, 128)
        c_hid_pad = _round_up(C_hid, chunk)
    n_hchunks = c_hid_pad // chunk
    pad_h = c_hid_pad - C_hid
    if pad_h:  # zero-padded hidden channels contribute exactly 0 to the score
        w1_f = jnp.pad(w1_f, ((0, pad_h), (0, 0)))
        b1_f = jnp.pad(b1_f, ((0, pad_h),))
        w2 = jnp.pad(w2, ((0, 0), (0, pad_h)))
    w1_bf = w1_f.astype(jnp.bfloat16)
    w2_bf = w2.astype(jnp.bfloat16)
    b1_f = b1_f.reshape(c_hid_pad, 1)
    b2_f = b2.astype(jnp.float32).reshape(1, 1)

    # Pixel axis: keep NCHW layout (pixels on lanes). Only pad to a multiple
    # of 128 (no dtype cast, no padding to tile_pixels -> no big HBM copies).
    P = H * W
    p_ceil = _round_up(P, 128)
    x = features.reshape(B, C_in, P)
    if p_ceil != P:
        x = jnp.pad(x, ((0, 0), (0, 0), (0, p_ceil - P)))

    # Pixel tile from a per-generation VMEM budget (v7x has half the VMEM).
    vmem_cap = _vmem_capacity_bytes()
    vmem_limit = min(vmem_cap // 2, 96 * 1024 * 1024)
    tile_budget = vmem_limit // 2     # headroom for compiler temporaries
    if tile_pixels is None:
        bytes_per_px = (2 * C_in * dsize       # x block, double-buffered
                        + chunk * 6            # h chunk (f32) + bf16 copy
                        + 8 * 4                # accumulator (8-sublane padded)
                        + 2 * 2 * 8 * dsize)   # 2 outputs, double-buffered
        tile_pixels = (tile_budget // bytes_per_px) // 128 * 128
        tile_pixels = max(256, min(8192, tile_pixels))
    else:
        tile_pixels = max(128, (tile_pixels // 128) * 128)
    tile_pixels = min(tile_pixels, p_ceil)

    n_ptiles = -(-p_ceil // tile_pixels)
    # v7x: keep >=2 steps along a "parallel" axis so both TensorCores work.
    if B == 1 and n_ptiles == 1 and p_ceil >= 256:
        tile_pixels = _round_up(p_ceil // 2, 128)
        n_ptiles = -(-p_ceil // tile_pixels)

    grid = (B, n_ptiles, n_hchunks)

    flops = 2 * B * p_ceil * c_hid_pad * (C_in + 1)
    transcendentals = 2 * B * p_ceil
    bytes_accessed = (B * C_in * p_ceil * dsize          # input
                      + 2 * B * p_ceil * dsize           # two outputs
                      + c_hid_pad * (C_in + 1) * 2       # bf16 weights
                      + c_hid_pad * 4)                   # f32 bias

    prob, score = pl.pallas_call(
        _attention_kernel,
        out_shape=(
            jax.ShapeDtypeStruct((B, 1, p_ceil), in_dtype),
            jax.ShapeDtypeStruct((B, 1, p_ceil), in_dtype),
        ),
        grid=grid,
        in_specs=[
            pl.BlockSpec((pl.Squeezed(), C_in, tile_pixels),
                         lambda b, p, h: (b, 0, p)),
            pl.BlockSpec((chunk, C_in), lambda b, p, h: (h, 0)),
            pl.BlockSpec((chunk, 1), lambda b, p, h: (h, 0)),
            pl.BlockSpec((1, chunk), lambda b, p, h: (0, h)),
            pl.BlockSpec((1, 1), lambda b, p, h: (0, 0)),
        ],
        out_specs=(
            pl.BlockSpec((pl.Squeezed(), 1, tile_pixels),
                         lambda b, p, h: (b, 0, p)),
            pl.BlockSpec((pl.Squeezed(), 1, tile_pixels),
                         lambda b, p, h: (b, 0, p)),
        ),
        scratch_shapes=[pltpu.VMEM((1, tile_pixels), jnp.float32)],
        compiler_params=pltpu.CompilerParams(
            dimension_semantics=("parallel", "parallel", "arbitrary"),
            vmem_limit_bytes=int(vmem_limit)),
        cost_estimate=pl.CostEstimate(flops=int(flops),
                                      transcendentals=int(transcendentals),
                                      bytes_accessed=int(bytes_accessed)),
    )(x, w1_bf, b1_f, w2_bf, b2_f)

    if p_ceil != P:
        prob = prob[:, :, :P]
        score = score[:, :, :P]
    return prob.reshape(B, 1, H, W), score.reshape(B, 1, H, W)


if __name__ == "__main__":
    # Small shapes consistent with the module: batch=2, in_channels=4,
    # spatial 16x16, hidden_filters=32 (module default is 512; kept small).
    B, C_in, H, W = 2, 4, 16, 16
    C_hid = 32

    key = jax.random.PRNGKey(0)
    keys = jax.random.split(key, 9)
    features = jax.random.normal(keys[0], (B, C_in, H, W), dtype=jnp.float32)

    bound1 = 1.0 / (C_in ** 0.5)
    w1 = jax.random.uniform(keys[1], (C_hid, C_in), minval=-bound1, maxval=bound1)
    b1 = jax.random.uniform(keys[2], (C_hid,), minval=-bound1, maxval=bound1)
    gamma = jax.random.uniform(keys[3], (C_hid,), minval=0.5, maxval=1.5)
    beta = jax.random.uniform(keys[4], (C_hid,), minval=-0.5, maxval=0.5)
    running_mean = jax.random.normal(keys[5], (C_hid,)) * 0.1
    running_var = jax.random.uniform(keys[6], (C_hid,), minval=0.5, maxval=1.5)
    bound2 = 1.0 / (C_hid ** 0.5)
    w2 = jax.random.uniform(keys[7], (1, C_hid), minval=-bound2, maxval=bound2)
    b2 = jax.random.uniform(keys[8], (1,), minval=-bound2, maxval=bound2)

    prob, score = attention_forward(features, w1, b1, gamma, beta,
                                    running_mean, running_var, w2, b2)
    prob, score = jax.block_until_ready((prob, score))

    # Plain-JAX f32 reference (explicit eval-mode BatchNorm, PyTorch math).
    eps = 1e-5
    xr = features.reshape(B, C_in, H * W)
    hr = jnp.einsum('oc,bcp->bop', w1, xr) + b1[None, :, None]
    hr = ((hr - running_mean[None, :, None])
          / jnp.sqrt(running_var[None, :, None] + eps)
          * gamma[None, :, None] + beta[None, :, None])
    hr = jnp.maximum(hr, 0.0)
    sr = jnp.einsum('oc,bcp->bop', w2, hr) + b2[None, :, None]
    pr = jnp.maximum(sr, 0.0) + jnp.log(1.0 + jnp.exp(-jnp.abs(sr)))
    sr = sr.reshape(B, 1, H, W)
    pr = pr.reshape(B, 1, H, W)

    assert prob.shape == (B, 1, H, W) and score.shape == (B, 1, H, W)
    # Kernel feeds bf16 operands to the MXU (f32 accumulation), so compare to
    # the f32 reference with a correspondingly relaxed tolerance.
    assert jnp.allclose(score, sr, atol=5e-2, rtol=5e-2)
    assert jnp.allclose(prob, pr, atol=5e-2, rtol=5e-2)

    print("KERNEL_OK")
</pallas_src>

<mosaic_0001>
module attributes {stable_mosaic.version = 11 : i64} {
  func.func @_attention_kernel(%arg0: i32, %arg1: i32, %arg2: i32, %arg3: memref<1x4x256xf32, #tpu.memory_space<vmem>>, %arg4: memref<32x4xbf16, #tpu.memory_space<vmem>>, %arg5: memref<32x1xf32, #tpu.memory_space<vmem>>, %arg6: memref<1x32xbf16, #tpu.memory_space<vmem>>, %arg7: memref<1x1xf32, #tpu.memory_space<vmem>>, %arg8: memref<1x1x256xf32, #tpu.memory_space<vmem>>, %arg9: memref<1x1x256xf32, #tpu.memory_space<vmem>>, %arg10: memref<1x256xf32, #tpu.memory_space<vmem>>) attributes {dimension_semantics = [#tpu.dimension_semantics<parallel>, #tpu.dimension_semantics<parallel>, #tpu.dimension_semantics<arbitrary>], iteration_bounds = array<i64: 2, 1, 1>, scalar_prefetch = 0 : i64, scratch_operands = 1 : i64, tpu.core_type = #tpu.core_type<tc>, window_params = [{transform_indices = @transform_0, window_bounds = array<i64: 1, 4, 256>}, {transform_indices = @transform_1, window_bounds = array<i64: 32, 4>}, {transform_indices = @transform_2, window_bounds = array<i64: 32, 1>}, {transform_indices = @transform_3, window_bounds = array<i64: 1, 32>}, {pipeline_mode = #tpu.pipeline_mode<synchronous>, transform_indices = @transform_4, window_bounds = array<i64: 1, 1>}, {transform_indices = @transform_5, window_bounds = array<i64: 1, 1, 256>}, {transform_indices = @transform_6, window_bounds = array<i64: 1, 1, 256>}]} {
    %c0_i32 = arith.constant 0 : i32
    %0 = arith.cmpi eq, %arg2, %c0_i32 : i32
    %1 = arith.extui %0 : i1 to i32
    %c0_i32_0 = arith.constant 0 : i32
    %2 = arith.cmpi ne, %1, %c0_i32_0 : i32
    scf.if %2 {
      %cst_17 = arith.constant 0.000000e+00 : f32
      %22 = vector.broadcast %cst_17 : f32 to vector<1x256xf32>
      %c0_18 = arith.constant 0 : index
      %c0_19 = arith.constant 0 : index
      %23 = vector.load %arg10[%c0_18, %c0_19] : memref<1x256xf32, #tpu.memory_space<vmem>>, vector<1x256xf32>
      tpu.vector_store %arg10[%c0_18, %c0_19], %22 {strides = array<i32>} : memref<1x256xf32, #tpu.memory_space<vmem>>, vector<1x256xf32>,
    } else {
    }
    %c0 = arith.constant 0 : index
    %c0_1 = arith.constant 0 : index
    %c0_2 = arith.constant 0 : index
    %3 = vector.load %arg3[%c0, %c0_1, %c0_2] : memref<1x4x256xf32, #tpu.memory_space<vmem>>, vector<1x4x256xf32>
    %4 = vector.shape_cast %3 : vector<1x4x256xf32> to vector<4x256xf32>
    %5 = arith.truncf %4 : vector<4x256xf32> to vector<4x256xbf16>
    %c0_3 = arith.constant 0 : index
    %c0_4 = arith.constant 0 : index
    %6 = vector.load %arg4[%c0_3, %c0_4] : memref<32x4xbf16, #tpu.memory_space<vmem>>, vector<32x4xbf16>
    %cst = arith.constant dense<0.000000e+00> : vector<32x256xf32>
    %7 = tpu.matmul %6, %5, %cst {dimension_numbers = #tpu.dot_dimension_numbers<[1], [0], [0], [1], [0, 0, 1, 1], [], []>} : vector<32x4xbf16>, vector<4x256xbf16>, vector<32x256xf32> -> vector<32x256xf32>
    %c0_5 = arith.constant 0 : index
    %c0_6 = arith.constant 0 : index
    %8 = vector.load %arg5[%c0_5, %c0_6] : memref<32x1xf32, #tpu.memory_space<vmem>>, vector<32x1xf32>
    %9 = vector.broadcast %8 : vector<32x1xf32> to vector<32x256xf32>
    %10 = arith.addf %7, %9 : vector<32x256xf32>
    %cst_7 = arith.constant 0.000000e+00 : f32
    %11 = vector.broadcast %cst_7 : f32 to vector<32x256xf32>
    %12 = arith.maximumf %10, %11 : vector<32x256xf32>
    %c0_8 = arith.constant 0 : index
    %c0_9 = arith.constant 0 : index
    %13 = vector.load %arg10[%c0_8, %c0_9] : memref<1x256xf32, #tpu.memory_space<vmem>>, vector<1x256xf32>
    %c0_10 = arith.constant 0 : index
    %c0_11 = arith.constant 0 : index
    %14 = vector.load %arg6[%c0_10, %c0_11] : memref<1x32xbf16, #tpu.memory_space<vmem>>, vector<1x32xbf16>
    %15 = arith.truncf %12 : vector<32x256xf32> to vector<32x256xbf16>
    %cst_12 = arith.constant dense<0.000000e+00> : vector<1x256xf32>
    %16 = tpu.matmul %14, %15, %cst_12 {dimension_numbers = #tpu.dot_dimension_numbers<[1], [0], [0], [1], [0, 0, 1, 1], [], []>} : vector<1x32xbf16>, vector<32x256xbf16>, vector<1x256xf32> -> vector<1x256xf32>
    %17 = arith.addf %13, %16 : vector<1x256xf32>
    %c0_13 = arith.constant 0 : index
    %c0_14 = arith.constant 0 : index
    %18 = vector.load %arg10[%c0_13, %c0_14] : memref<1x256xf32, #tpu.memory_space<vmem>>, vector<1x256xf32>
    tpu.vector_store %arg10[%c0_13, %c0_14], %17 {strides = array<i32>} : memref<1x256xf32, #tpu.memory_space<vmem>>, vector<1x256xf32>,
    %c0_i32_15 = arith.constant 0 : i32
    %19 = arith.cmpi eq, %arg2, %c0_i32_15 : i32
    %20 = arith.extui %19 : i1 to i32
    %c0_i32_16 = arith.constant 0 : i32
    %21 = arith.cmpi ne, %20, %c0_i32_16 : i32
    scf.if %21 {
      %c0_17 = arith.constant 0 : index
      %c0_18 = arith.constant 0 : index
      %22 = vector.load %arg10[%c0_17, %c0_18] : memref<1x256xf32, #tpu.memory_space<vmem>>, vector<1x256xf32>
      %c0_19 = arith.constant 0 : index
      %c0_20 = arith.constant 0 : index
      %23 = vector.load %arg7[%c0_19, %c0_20] : memref<1x1xf32, #tpu.memory_space<vmem>>, vector<1x1xf32>
      %24 = vector.broadcast %23 : vector<1x1xf32> to vector<1x256xf32>
      %25 = arith.addf %22, %24 : vector<1x256xf32>
      %c0_21 = arith.constant 0 : index
      %c0_22 = arith.constant 0 : index
      %c0_23 = arith.constant 0 : index
      %26 = vector.load %arg9[%c0_21, %c0_22, %c0_23] : memref<1x1x256xf32, #tpu.memory_space<vmem>>, vector<1x1x256xf32>
      %27 = vector.shape_cast %26 : vector<1x1x256xf32> to vector<1x256xf32>
      %28 = vector.shape_cast %25 : vector<1x256xf32> to vector<1x1x256xf32>
      tpu.vector_store %arg9[%c0_21, %c0_22, %c0_23], %28 {strides = array<i32>} : memref<1x1x256xf32, #tpu.memory_space<vmem>>, vector<1x1x256xf32>,
      %cst_24 = arith.constant 0.000000e+00 : f32
      %29 = vector.broadcast %cst_24 : f32 to vector<1x256xf32>
      %30 = arith.maximumf %25, %29 : vector<1x256xf32>
      %31 = math.absf %25 : vector<1x256xf32>
      %cst_25 = arith.constant 0.000000e+00 : f32
      %32 = vector.broadcast %cst_25 : f32 to vector<1x256xf32>
      %33 = arith.subf %32, %31 : vector<1x256xf32>
      %34 = math.exp %33 : vector<1x256xf32>
      %cst_26 = arith.constant 1.000000e+00 : f32
      %35 = vector.broadcast %cst_26 : f32 to vector<1x256xf32>
      %36 = arith.addf %35, %34 : vector<1x256xf32>
      %37 = math.log %36 : vector<1x256xf32>
      %38 = arith.addf %30, %37 : vector<1x256xf32>
      %c0_27 = arith.constant 0 : index
      %c0_28 = arith.constant 0 : index
      %c0_29 = arith.constant 0 : index
      %39 = vector.load %arg8[%c0_27, %c0_28, %c0_29] : memref<1x1x256xf32, #tpu.memory_space<vmem>>, vector<1x1x256xf32>
      %40 = vector.shape_cast %39 : vector<1x1x256xf32> to vector<1x256xf32>
      %41 = vector.shape_cast %38 : vector<1x256xf32> to vector<1x1x256xf32>
      tpu.vector_store %arg8[%c0_27, %c0_28, %c0_29], %41 {strides = array<i32>} : memref<1x1x256xf32, #tpu.memory_space<vmem>>, vector<1x1x256xf32>,
    } else {
    }
    return
  }
  func.func @transform_0(%arg0: i32, %arg1: i32, %arg2: i32) -> (i32, i32, i32) {
    %c0_i32 = arith.constant 0 : i32
    %c0_i32_0 = arith.constant 0 : i32
    return %arg0, %c0_i32, %arg1 : i32, i32, i32
  }
  func.func @transform_1(%arg0: i32, %arg1: i32, %arg2: i32) -> (i32, i32) {
    %c0_i32 = arith.constant 0 : i32
    %c0_i32_0 = arith.constant 0 : i32
    return %arg2, %c0_i32 : i32, i32
  }
  func.func @transform_2(%arg0: i32, %arg1: i32, %arg2: i32) -> (i32, i32) {
    %c0_i32 = arith.constant 0 : i32
    %c0_i32_0 = arith.constant 0 : i32
    return %arg2, %c0_i32 : i32, i32
  }
  func.func @transform_3(%arg0: i32, %arg1: i32, %arg2: i32) -> (i32, i32) {
    %c0_i32 = arith.constant 0 : i32
    %c0_i32_0 = arith.constant 0 : i32
    return %c0_i32, %arg2 : i32, i32
  }
  func.func @transform_4(%arg0: i32, %arg1: i32, %arg2: i32) -> (i32, i32) {
    %c0_i32 = arith.constant 0 : i32
    %c0_i32_0 = arith.constant 0 : i32
    %c0_i32_1 = arith.constant 0 : i32
    return %c0_i32, %c0_i32_0 : i32, i32
  }
  func.func @transform_5(%arg0: i32, %arg1: i32, %arg2: i32) -> (i32, i32, i32) {
    %c0_i32 = arith.constant 0 : i32
    %c0_i32_0 = arith.constant 0 : i32
    return %arg0, %c0_i32, %arg1 : i32, i32, i32
  }
  func.func @transform_6(%arg0: i32, %arg1: i32, %arg2: i32) -> (i32, i32, i32) {
    %c0_i32 = arith.constant 0 : i32
    %c0_i32_0 = arith.constant 0 : i32
    return %arg0, %c0_i32, %arg1 : i32, i32, i32
  }
}

</mosaic_0001>

<llo_original>
// kernel: tpu_custom_call.1
$region0: #{tpu_custom_call.1}
  #allocation0 [shape = 'u32[]', space=smem, size = 0x4, offset = 0x4, fixed_abs, tag = 'smem constant byte address 0x4 - core index']
  #allocation1 [shape = 'u32[72,128]{1,0:T(1,128)}', space=vmem, size = 0x9000, scoped, tag = 'internal scratch']
  #allocation2 [shape = 'f32[1,256]{1,0:T(1,128)}', space=vmem, size = 0x400, scoped, tag = 'scratch operand']
  #allocation3 [shape = 'f32[1,1]{1,0:T(1,128)S(1)}', space=vmem, size = 0x200, scoped, tag = 'scoped memory for tpu_custom_call.1']
  %s0 = inlined_call_operand.vmem [shape: f32[2,4,256], index: 0, kind: input, shape index: {}]
  %s1 = inlined_call_operand.vmem [shape: bf16[32,4], index: 1, kind: input, shape index: {}]
  %s2 = inlined_call_operand.vmem [shape: f32[32,1], index: 2, kind: input, shape index: {}]
  %s3 = inlined_call_operand.vmem [shape: bf16[1,32], index: 3, kind: input, shape index: {}]
  %s4 = inlined_call_operand.<no memory space> [shape: f32[1,1], index: 4, kind: input, shape index: {}]
  %s5 = inlined_call_operand.hbm [shape: f32[2,1,256], index: 5, kind: output, shape index: {0}]
  %s6 = inlined_call_operand.hbm [shape: f32[2,1,256], index: 6, kind: output, shape index: {1}]
  %7 = xla_tuple %s5, %s6
  %s8 = sld [smem:[#allocation0]]
  $region69: #{tpu_custom_call.1} parent=0
    _
  %s10 = ssub.s32 1, %s8
  %s11 = scalar_select 0, %s10, %s8
  %v12 = vstv %s4
  %13 = vst [vmem:[#allocation3] sm:$0x1] %v12
  $region1: #{tpu_custom_call.1} parent=0
    #allocation4 [shape = 'u8[2048]{0}', space=vmem, size = 0x800, scoped, tag = 'output window, operand 0']
    #allocation5 [shape = 's32[2]{0}', space=sflag, size = 0x8, scoped, tag = 'scoped memory for tpu_custom_call.1']
    #allocation6 [shape = 'u8[2048]{0}', space=vmem, size = 0x800, scoped, tag = 'output window, operand 1']
    #allocation7 [shape = 's32[2]{0}', space=sflag, size = 0x8, scoped, tag = 'scoped memory for tpu_custom_call.1']
    %14 = vsyncpa [#allocation5], 0
    %s15 = scalar_lea.sflag [#allocation5], 1
    %16 = vsyncpa %s15, 0
    %17 = vsyncpa [#allocation7], 0
    %s18 = scalar_lea.sflag [#allocation7], 1
    %19 = vsyncpa %s18, 0
    loop: start=0, step=1, limit=4
    $region2: #{tpu_custom_call.1} parent=1 // loop_pre_header
      _
    $region3: #{tpu_custom_call.1} parent=1 // loop_header
      %s21 = sphi 0, %s25
      %p22 = scmp.ge.s32.totalorder %s21, 4
      %s28 = sphi 0, %s47
      %s29 = sphi 0, %s43
      %s30 = sphi 0, %s39
      %s31 = sphi 0, %s28
      %s32 = sphi 0, %s29
      %s33 = sphi 0, %s30
      %s34 = sphi 0, %s31
      %s35 = sphi 0, %s32
      %s36 = sphi 0, %s33
      %s52 = sphi 0, %s54
      %s55 = sphi 0, %s52
      %s56 = sphi 0, %s55
      %s72 = sphi 0, %s56
      %s78 = sphi 0, %s80
      %s81 = sphi 0, %s78
      %s82 = sphi 0, %s81
      %s98 = sphi 0, %s82
      %s104 = sphi 0, %s106
      %s107 = sphi 0, %s104
      %s108 = sphi 0, %s107
      %s124 = sphi 0, %s108
      %s130 = sphi 0, %s132
      %s133 = sphi 0, %s130
      %s134 = sphi 0, %s133
      %s150 = sphi 0, %s134
      %s154 = sphi 0, %s154
      %s156 = sphi 0, %s154
      %s157 = sphi 0, %s156
      %s171 = sphi 0, %s157
      %s179 = sphi 0, %s181
      %s182 = sphi 0, %s179
      %s183 = sphi 0, %s182
      %s199 = sphi 0, %s183
      %s207 = sphi 0, %s209
      %s210 = sphi 0, %s207
      %s211 = sphi 0, %s210
      %s227 = sphi 0, %s211
    $region4: #{tpu_custom_call.1} parent=1 // loop_header_branch
      %24 = sbr.rel (%p22) target = $region8
    $region5: #{tpu_custom_call.1} parent=1 // loop_body
      %s26 = ssub.s32 %s21, 1
      %s27 = ssub.s32 %s21, 2
      %s37 = sadd.s32 1, %s30
      %p38 = scmp.ge.s32.totalorder %s37, 1
      %s39 = scalar_select %p38, 0, %s37
      %s40 = sadd.s32 1, %s29
      %s41 = scalar_select %p38, %s40, %s29
      %p42 = scmp.ge.s32.totalorder %s41, 1
      %s43 = scalar_select %p42, 0, %s41
      %s44 = sadd.s32 1, %s28
      %s45 = scalar_select %p42, %s44, %s28
      %p46 = scmp.ge.s32.totalorder %s45, 2
      %s47 = scalar_select %p46, 0, %s45
      %s48 = ssub.s32 %s28, %s47
      %s49 = ssub.s32 %s29, %s43
      %s50 = sor.u32 %s48, %s49
      %p51 = scmp.eq.s32.totalorder %s50, 0
      %s53 = sadd.s32 %s52, 1
      %s54 = scalar_select %p51, %s52, %s53
      %p57 = pneg %p51
      %p58 = scmp.eq.s32.totalorder %s21, 1
      %p59 = por %p57, %p58
      %p60 = scmp.ne.s32.totalorder %s52, %s55
      %p61 = scmp.eq.s32.totalorder %s21, 0
      %p62 = por %p60, %p61
      %p63 = scmp.ne.s32.totalorder %s52, %s55
      %p64 = scmp.eq.s32.totalorder %s26, 1
      %p65 = por %p63, %p64
      %p66 = scmp.ne.s32.totalorder %s55, %s56
      %p67 = scmp.eq.s32.totalorder %s26, 0
      %p68 = por %p66, %p67
      %p69 = scmp.ne.s32.totalorder %s55, %s56
      %p70 = scmp.eq.s32.totalorder %s27, 1
      %p71 = por %p69, %p70
      %p73 = scmp.ne.s32.totalorder %s56, %s72
      %p74 = scmp.eq.s32.totalorder %s27, 0
      %p75 = por %p73, %p74
      %s76 = ssub.s32 %s30, %s39
      %p77 = scmp.eq.s32.totalorder %s76, 0
      %s79 = sadd.s32 %s78, 1
      %s80 = scalar_select %p77, %s78, %s79
      %p83 = pneg %p77
      %p84 = scmp.eq.s32.totalorder %s21, 1
      %p85 = por %p83, %p84
      %p86 = scmp.ne.s32.totalorder %s78, %s81
      %p87 = scmp.eq.s32.totalorder %s21, 0
      %p88 = por %p86, %p87
      %p89 = scmp.ne.s32.totalorder %s78, %s81
      %p90 = scmp.eq.s32.totalorder %s26, 1
      %p91 = por %p89, %p90
      %p92 = scmp.ne.s32.totalorder %s81, %s82
      %p93 = scmp.eq.s32.totalorder %s26, 0
      %p94 = por %p92, %p93
      %p95 = scmp.ne.s32.totalorder %s81, %s82
      %p96 = scmp.eq.s32.totalorder %s27, 1
      %p97 = por %p95, %p96
      %p99 = scmp.ne.s32.totalorder %s82, %s98
      %p100 = scmp.eq.s32.totalorder %s27, 0
      %p101 = por %p99, %p100
      %s102 = ssub.s32 %s30, %s39
      %p103 = scmp.eq.s32.totalorder %s102, 0
      %s105 = sadd.s32 %s104, 1
      %s106 = scalar_select %p103, %s104, %s105
      %p109 = pneg %p103
      %p110 = scmp.eq.s32.totalorder %s21, 1
      %p111 = por %p109, %p110
      %p112 = scmp.ne.s32.totalorder %s104, %s107
      %p113 = scmp.eq.s32.totalorder %s21, 0
      %p114 = por %p112, %p113
      %p115 = scmp.ne.s32.totalorder %s104, %s107
      %p116 = scmp.eq.s32.totalorder %s26, 1
      %p117 = por %p115, %p116
      %p118 = scmp.ne.s32.totalorder %s107, %s108
      %p119 = scmp.eq.s32.totalorder %s26, 0
      %p120 = por %p118, %p119
      %p121 = scmp.ne.s32.totalorder %s107, %s108
      %p122 = scmp.eq.s32.totalorder %s27, 1
      %p123 = por %p121, %p122
      %p125 = scmp.ne.s32.totalorder %s108, %s124
      %p126 = scmp.eq.s32.totalorder %s27, 0
      %p127 = por %p125, %p126
      %s128 = ssub.s32 %s30, %s39
      %p129 = scmp.eq.s32.totalorder %s128, 0
      %s131 = sadd.s32 %s130, 1
      %s132 = scalar_select %p129, %s130, %s131
      %p135 = pneg %p129
      %p136 = scmp.eq.s32.totalorder %s21, 1
      %p137 = por %p135, %p136
      %p138 = scmp.ne.s32.totalorder %s130, %s133
      %p139 = scmp.eq.s32.totalorder %s21, 0
      %p140 = por %p138, %p139
      %p141 = scmp.ne.s32.totalorder %s130, %s133
      %p142 = scmp.eq.s32.totalorder %s26, 1
      %p143 = por %p141, %p142
      %p144 = scmp.ne.s32.totalorder %s133, %s134
      %p145 = scmp.eq.s32.totalorder %s26, 0
      %p146 = por %p144, %p145
      %p147 = scmp.ne.s32.totalorder %s133, %s134
      %p148 = scmp.eq.s32.totalorder %s27, 1
      %p149 = por %p147, %p148
      %p151 = scmp.ne.s32.totalorder %s134, %s150
      %p152 = scmp.eq.s32.totalorder %s27, 0
      %p153 = por %p151, %p152
      %s155 = sadd.s32 %s154, 1
      %p158 = scmp.eq.s32.totalorder %s21, 1
      %p159 = scmp.ne.s32.totalorder %s154, %s156
      %p160 = scmp.eq.s32.totalorder %s21, 0
      %p161 = por %p159, %p160
      %p162 = scmp.ne.s32.totalorder %s154, %s156
      %p163 = scmp.eq.s32.totalorder %s26, 1
      %p164 = por %p162, %p163
      %p165 = scmp.ne.s32.totalorder %s156, %s157
      %p166 = scmp.eq.s32.totalorder %s26, 0
      %p167 = por %p165, %p166
      %p168 = scmp.ne.s32.totalorder %s156, %s157
      %p169 = scmp.eq.s32.totalorder %s27, 1
      %p170 = por %p168, %p169
      %p172 = scmp.ne.s32.totalorder %s157, %s171
      %p173 = scmp.eq.s32.totalorder %s27, 0
      %p174 = por %p172, %p173
      %s175 = ssub.s32 %s28, %s47
      %s176 = ssub.s32 %s29, %s43
      %s177 = sor.u32 %s175, %s176
      %p178 = scmp.eq.s32.totalorder %s177, 0
      %s180 = sadd.s32 %s179, 1
      %s181 = scalar_select %p178, %s179, %s180
      %p184 = pneg %p178
      %p185 = scmp.eq.s32.totalorder %s21, 1
      %p186 = por %p184, %p185
      %p187 = scmp.ne.s32.totalorder %s179, %s182
      %p188 = scmp.eq.s32.totalorder %s21, 0
      %p189 = por %p187, %p188
      %p190 = scmp.ne.s32.totalorder %s179, %s182
      %p191 = scmp.eq.s32.totalorder %s26, 1
      %p192 = por %p190, %p191
      %p193 = scmp.ne.s32.totalorder %s182, %s183
      %p194 = scmp.eq.s32.totalorder %s26, 0
      %p195 = por %p193, %p194
      %p196 = scmp.ne.s32.totalorder %s182, %s183
      %p197 = scmp.eq.s32.totalorder %s27, 1
      %p198 = por %p196, %p197
      %p200 = scmp.ne.s32.totalorder %s183, %s199
      %p201 = scmp.eq.s32.totalorder %s27, 0
      %p202 = por %p200, %p201
      %s203 = ssub.s32 %s28, %s47
      %s204 = ssub.s32 %s29, %s43
      %s205 = sor.u32 %s203, %s204
      %p206 = scmp.eq.s32.totalorder %s205, 0
      %s208 = sadd.s32 %s207, 1
      %s209 = scalar_select %p206, %s207, %s208
      %p212 = pneg %p206
      %p213 = scmp.eq.s32.totalorder %s21, 1
      %p214 = por %p212, %p213
      %p215 = scmp.ne.s32.totalorder %s207, %s210
      %p216 = scmp.eq.s32.totalorder %s21, 0
      %p217 = por %p215, %p216
      %p218 = scmp.ne.s32.totalorder %s207, %s210
      %p219 = scmp.eq.s32.totalorder %s26, 1
      %p220 = por %p218, %p219
      %p221 = scmp.ne.s32.totalorder %s210, %s211
      %p222 = scmp.eq.s32.totalorder %s26, 0
      %p223 = por %p221, %p222
      %p224 = scmp.ne.s32.totalorder %s210, %s211
      %p225 = scmp.eq.s32.totalorder %s27, 1
      %p226 = por %p224, %p225
      %p228 = scmp.ne.s32.totalorder %s211, %s227
      %p229 = scmp.eq.s32.totalorder %s27, 0
      %p230 = por %p228, %p229
      %p231 = scmp.le.s32.totalorder 1, %s21
      %p232 = scmp.lt.s32.totalorder %s21, 3
      %p233 = pnand %p231, %p232
      %p234 = pneg %p233
      // Predicated region
      $region9: #{tpu_custom_call.1} parent=5 // pred_check
        _
      $region10: #{tpu_custom_call.1} parent=5 // pred_check_branch
        %236 = sbr.rel (%p233) target = $region12
      $region11: #{tpu_custom_call.1} parent=5 // pred_region
        %s237 = ssub.s32 %s21, 1
        // Predicated region
        $region13: #{tpu_custom_call.1} parent=11 // pred_check
          %p238 = pneg %p94
        $region14: #{tpu_custom_call.1} parent=11 // pred_check_branch
          %240 = sbr.rel (%p238) target = $region16
        $region15: #{tpu_custom_call.1} parent=11 // pred_region
          %s241 = smul.u32 4, %s33
          %p242 = scmp.lt.s32.totalorder %s241, 3
          %s243 = scalar_select %p242, %s241, 3
          %s244 = smul.addr %s243, 4
          %s245 = scalar_lea.vmem %s1, %s244
          %s246 = smul.u32 4, %s33
        $region16: #{tpu_custom_call.1} parent=11 // pred_fallthru
          _
        // Predicated region
        $region17: #{tpu_custom_call.1} parent=11 // pred_check
          %p247 = pneg %p120
        $region18: #{tpu_custom_call.1} parent=11 // pred_check_branch
          %249 = sbr.rel (%p247) target = $region20
        $region19: #{tpu_custom_call.1} parent=11 // pred_region
          %s250 = smul.u32 4, %s33
          %p251 = scmp.lt.s32.totalorder %s250, 3
          %s252 = scalar_select %p251, %s250, 3
          %s253 = smul.addr %s252, 8
          %s254 = scalar_lea.vmem %s2, %s253
          %s255 = smul.u32 4, %s33
        $region20: #{tpu_custom_call.1} parent=11 // pred_fallthru
          _
        // Predicated region
        $region21: #{tpu_custom_call.1} parent=11 // pred_check
          %p256 = pneg %p146
        $region22: #{tpu_custom_call.1} parent=11 // pred_check_branch
          %258 = sbr.rel (%p256) target = $region24
        $region23: #{tpu_custom_call.1} parent=11 // pred_region
          %p259 = scmp.lt.s32.totalorder %s33, 0
          %s260 = scalar_select %p259, %s33, 0
          %s261 = scalar_lea.vmem %s3, %s260
        $region24: #{tpu_custom_call.1} parent=11 // pred_fallthru
          _
        // Predicated region
        $region25: #{tpu_custom_call.1} parent=11 // pred_check
          %p262 = pneg %p167
        $region26: #{tpu_custom_call.1} parent=11 // pred_check_branch
          %264 = sbr.rel (%p262) target = $region28
        $region27: #{tpu_custom_call.1} parent=11 // pred_region
          _
        $region28: #{tpu_custom_call.1} parent=11 // pred_fallthru
          _
      $region12: #{tpu_custom_call.1} parent=5 // pred_fallthru
        _
      %p265 = scmp.lt.s32.totalorder %s21, 2
      // Predicated region
      $region29: #{tpu_custom_call.1} parent=5 // pred_check
        %p266 = pneg %p265
      $region30: #{tpu_custom_call.1} parent=5 // pred_check_branch
        %268 = sbr.rel (%p266) target = $region32
      $region31: #{tpu_custom_call.1} parent=5 // pred_region
        // Predicated region
        $region33: #{tpu_custom_call.1} parent=31 // pred_check
          %p269 = pneg %p62
        $region34: #{tpu_custom_call.1} parent=31 // pred_check_branch
          %271 = sbr.rel (%p269) target = $region36
        $region35: #{tpu_custom_call.1} parent=31 // pred_region
          %s272 = smul.u32 2, %s29
          %p273 = scmp.lt.s32.totalorder %s28, 1
          %s274 = scalar_select %p273, %s28, 1
          %p275 = scmp.lt.s32.totalorder %s272, 1
          %s276 = scalar_select %p275, %s272, 1
          %s277 = smul.addr %s274, 2
          %s278 = sadd.s32 %s276, %s277
          %s279 = smul.addr %s278, 4
          %s280 = scalar_lea.vmem %s0, %s279
          %s281 = smul.u32 2, %s29
        $region36: #{tpu_custom_call.1} parent=31 // pred_fallthru
          _
      $region32: #{tpu_custom_call.1} parent=5 // pred_fallthru
        _
      %p282 = scmp.le.s32.totalorder 1, %s21
      %p283 = scmp.lt.s32.totalorder %s21, 3
      %p284 = pnand %p282, %p283
      %p285 = pneg %p284
      // Predicated region
      $region37: #{tpu_custom_call.1} parent=5 // pred_check
        _
      $region38: #{tpu_custom_call.1} parent=5 // pred_check_branch
        %287 = sbr.rel (%p284) target = $region40
      $region39: #{tpu_custom_call.1} parent=5 // pred_region
        %s288 = ssub.s32 %s21, 1
        %s289 = smul.u32 2, %s32
        %p290 = scmp.lt.s32.totalorder %s31, 1
        %s291 = scalar_select %p290, %s31, 1
        %p292 = scmp.lt.s32.totalorder %s289, 1
        %s293 = scalar_select %p292, %s289, 1
        %s294 = smul.addr %s291, 2
        %s295 = sadd.s32 %s293, %s294
        %s296 = smul.addr %s295, 4
        %s297 = scalar_lea.vmem %s0, %s296
        %p298 = pneg %p68
        %p299 = pneg %p65
        %s300 = smul.u32 4, %s33
        %p301 = scmp.lt.s32.totalorder %s300, 3
        %s302 = scalar_select %p301, %s300, 3
        %s303 = smul.addr %s302, 4
        %s304 = scalar_lea.vmem %s1, %s303
        %p305 = pneg %p94
        %p306 = pneg %p91
        %s307 = smul.u32 4, %s33
        %p308 = scmp.lt.s32.totalorder %s307, 3
        %s309 = scalar_select %p308, %s307, 3
        %s310 = smul.addr %s309, 8
        %s311 = scalar_lea.vmem %s2, %s310
        %p312 = pneg %p120
        %p313 = pneg %p117
        %p314 = scmp.lt.s32.totalorder %s33, 0
        %s315 = scalar_select %p314, %s33, 0
        %s316 = scalar_lea.vmem %s3, %s315
        %p317 = pneg %p146
        %p318 = pneg %p143
        %p319 = pneg %p167
        %p320 = pneg %p164
        %p321 = pneg %p195
        %p322 = pneg %p192
        %s323 = sand.u32 %s182, 1
        %s324 = scalar_lea.sflag [#allocation5], %s323
        %s325 = sand.u32 %s182, 1
        %s326 = smul.addr %s325, 2
        %s327 = scalar_lea.vmem [#allocation4], %s326
        %p328 = pneg %p223
        %p329 = pneg %p220
        %s330 = sand.u32 %s210, 1
        %s331 = scalar_lea.sflag [#allocation7], %s330
        %s332 = sand.u32 %s210, 1
        %s333 = smul.addr %s332, 2
        %s334 = scalar_lea.vmem [#allocation6], %s333
        %s335 = smul.u32 2, %s32
        %p336 = scmp.lt.s32.totalorder %s31, 1
        %s337 = scalar_select %p336, %s31, 1
        %p338 = scmp.lt.s32.totalorder %s335, 1
        %s339 = scalar_select %p338, %s335, 1
        %s340 = smul.addr %s337, 2
        %s341 = sadd.s32 %s339, %s340
        %s342 = smul.addr %s341, 4
        %s343 = scalar_lea.vmem %s0, %s342
        %s344 = smul.u32 2, %s32
        %s345 = smul.u32 4, %s33
        %p346 = scmp.lt.s32.totalorder %s345, 3
        %s347 = scalar_select %p346, %s345, 3
        %s348 = smul.addr %s347, 4
        %s349 = scalar_lea.vmem %s1, %s348
        %s350 = smul.u32 4, %s33
        %s351 = smul.u32 4, %s33
        %p352 = scmp.lt.s32.totalorder %s351, 3
        %s353 = scalar_select %p352, %s351, 3
        %s354 = smul.addr %s353, 8
        %s355 = scalar_lea.vmem %s2, %s354
        %s356 = smul.u32 4, %s33
        %p357 = scmp.lt.s32.totalorder %s33, 0
        %s358 = scalar_select %p357, %s33, 0
        %s359 = scalar_lea.vmem %s3, %s358
        %s360 = smul.u32 2, %s32
        %s361 = smul.u32 2, %s32
        %p363 = scmp.eq.s32.totalorder %s33, 0
        // Predicated region
        $region41: #{tpu_custom_call.1} parent=39 // pred_check
          %p364 = pneg %p363
        $region42: #{tpu_custom_call.1} parent=39 // pred_check_branch
          %366 = sbr.rel (%p364) target = $region44
        $region43: #{tpu_custom_call.1} parent=39 // pred_region
          %v367 = vlaneseq
          %vm368 = vcmp.ge.s32.totalorder %v367, 0
          %vm369 = vcmp.lt.s32.totalorder %v367, 256
          %vm370 = vmand %vm368, %vm369
          %371 = vst.msk [vmem:[#allocation2] sm:$0x3] %vm370, 0.0
        $region44: #{tpu_custom_call.1} parent=39 // pred_fallthru
          _
        %v372 = vld [vmem:[%s343] sm:$0xff]
        %374 = vst [vmem:[#allocation1] ss:$2 sm:$0xff] %v372
        %v375 = vld.sshfl [vmem:[#allocation1] sm:$0xff pattern:$0x75316420]
        %v376 = vld.sshfl [vmem:[#allocation1 + $0x8] sm:$0xff pattern:$0x75316420]
        %v379 = vpack.c.bf16 %v375, %v375
        %v380 = vpack.c.bf16 %v376, %v376
        %v381 = vld [vmem:[%s349] sm:$0xf]
        %v382 = vld [vmem:[%s349 + $0x4] sm:$0xf]
        %v383 = vld [vmem:[%s349 + $0x8] sm:$0xf]
        %v384 = vld [vmem:[%s349 + $0xc] sm:$0xf]
        %v385 = vld [vmem:[%s355] sm:$0xff]
        %v386 = vld [vmem:[%s355 + $0x8] sm:$0xff]
        %v387 = vld [vmem:[%s355 + $0x10] sm:$0xff]
        %v388 = vld [vmem:[%s355 + $0x18] sm:$0xff]
        %390 = vset.pattern.permute.xlu0 0
        %391 = vperm.xlu0 %390, %v385
        %v392 = vpop.permute.xlu0 %391
        %395 = vset.pattern.permute.xlu0 0
        %396 = vperm.xlu0 %395, %v386
        %v397 = vpop.permute.xlu0 %396
        %400 = vset.pattern.permute.xlu0 0
        %401 = vperm.xlu0 %400, %v387
        %v402 = vpop.permute.xlu0 %401
        %405 = vset.pattern.permute.xlu0 0
        %406 = vperm.xlu0 %405, %v388
        %v407 = vpop.permute.xlu0 %406
        %v413 = vunpack.c.l.b16 %v381
        %v414 = vunpack.c.l.b16 %v382
        %v415 = vunpack.c.l.b16 %v383
        %v416 = vunpack.c.l.b16 %v384
        %v417 = vpack.c.b16 %v414, %v413
        %v418 = vpack.c.b16 %v416, %v415
        %vm419 = vcmask 31744
        %v421 = vsel %vm419, %v417, 0
        %v424 = vsel %vm419, %v418, 0
        %vm426 = vcmask 1041408
        %v428 = vsel %vm426, %v379, 0
        %v431 = vsel %vm426, %v380, 0
        %433 = vmatpush.bf16.msra.mxu0 0
        %434 = vmatpush.bf16.msra.mxu0 0
        %435 = vmatpush.bf16.msra.mxu0 0
        %436 = vmatpush.bf16.msra.mxu0 0
        %437 = vmatpush.bf16.msra.mxu0 0
        %438 = vmatpush.bf16.msra.mxu0 0
        %439 = vmatpush.bf16.msra.mxu0 0
        %440 = vmatpush.bf16.msra.mxu0 %v428
        %441 = vmatmul.bf16.gmra.mxu0 %v421
        %v442 = vpop.f32.mrf.mxu0
        %v443 = vadd.f32 %v392, %v442
        %v444 = vpop.f32.mrf.mxu0
        %v445 = vadd.f32 %v397, %v444
        %446 = vmatmul.bf16.gmra.mxu0 %v424
        %v447 = vpop.f32.mrf.mxu0
        %v448 = vadd.f32 %v402, %v447
        %v449 = vpop.f32.mrf.mxu0
        %v450 = vadd.f32 %v407, %v449
        %451 = vdwg.mxu0
        %452 = vmatpush.bf16.msra.mxu0 0
        %453 = vmatpush.bf16.msra.mxu0 0
        %454 = vmatpush.bf16.msra.mxu0 0
        %455 = vmatpush.bf16.msra.mxu0 0
        %456 = vmatpush.bf16.msra.mxu0 0
        %457 = vmatpush.bf16.msra.mxu0 0
        %458 = vmatpush.bf16.msra.mxu0 0
        %459 = vmatpush.bf16.msra.mxu0 %v431
        %460 = vmatmul.bf16.gmra.mxu0 %v421
        %v461 = vpop.f32.mrf.mxu0
        %v462 = vadd.f32 %v392, %v461
        %v463 = vpop.f32.mrf.mxu0
        %v464 = vadd.f32 %v397, %v463
        %465 = vmatmul.bf16.gmra.mxu0 %v424
        %v466 = vpop.f32.mrf.mxu0
        %v467 = vadd.f32 %v402, %v466
        %v468 = vpop.f32.mrf.mxu0
        %v469 = vadd.f32 %v407, %v468
        %470 = vdwg.mxu0
        %v471 = vmax.f32 %v443, 0.0
        %v472 = vmax.f32 %v462, 0.0
        %v473 = vmax.f32 %v445, 0.0
        %v474 = vmax.f32 %v464, 0.0
        %v475 = vmax.f32 %v448, 0.0
        %v476 = vmax.f32 %v467, 0.0
        %v477 = vmax.f32 %v450, 0.0
        %v478 = vmax.f32 %v469, 0.0
        %v479 = vld [vmem:[#allocation2] sm:$0x3]
        %v480 = vld [vmem:[%s359] sm:$0x1]
        %v481 = vpack.c.bf16 %v473, %v471
        %v482 = vpack.c.bf16 %v474, %v472
        %v483 = vpack.c.bf16 %v477, %v475
        %v484 = vpack.c.bf16 %v478, %v476
        %vm485 = vcmask 261120
        %v487 = vsel %vm485, %v480, 0
        %489 = vmatpush.bf16.msra.mxu0 0
        %490 = vmatpush.bf16.msra.mxu0 0
        %491 = vmatpush.bf16.msra.mxu0 0
        %492 = vmatpush.bf16.msra.mxu0 0
        %493 = vmatpush.bf16.msra.mxu0 0
        %494 = vmatpush.bf16.msra.mxu0 0
        %495 = vmatpush.bf16.msra.mxu0 %v483
        %496 = vmatpush.bf16.msra.mxu0 %v481
        %497 = vmatmul.bf16.gmra.mxu0 %v487
        %v498 = vpop.f32.mrf.mxu0
        %v499 = vadd.f32 0.0, %v498
        %v500 = vpop.f32.mrf.mxu0
        %501 = vdwg.mxu0
        %502 = vmatpush.bf16.msra.mxu0 0
        %503 = vmatpush.bf16.msra.mxu0 0
        %504 = vmatpush.bf16.msra.mxu0 0
        %505 = vmatpush.bf16.msra.mxu0 0
        %506 = vmatpush.bf16.msra.mxu0 0
        %507 = vmatpush.bf16.msra.mxu0 0
        %508 = vmatpush.bf16.msra.mxu0 %v484
        %509 = vmatpush.bf16.msra.mxu0 %v482
        %510 = vmatmul.bf16.gmra.mxu0 %v487
        %v511 = vpop.f32.mrf.mxu0
        %v512 = vadd.f32 0.0, %v511
        %v513 = vpop.f32.mrf.mxu0
        %514 = vdwg.mxu0
        %v517 = vrot.slane %v512, 7
        %vm518 = vcmask 1040384
        %v519 = vsel %vm518, %v499, %v517
        %v521 = vadd.f32 %v479, %v519
        %v522 = vlaneseq
        %vm523 = vcmp.ge.s32.totalorder %v522, 0
        %vm524 = vcmp.lt.s32.totalorder %v522, 256
        %vm525 = vmand %vm523, %vm524
        %526 = vst.msk [vmem:[#allocation2] sm:$0x3] %vm525, %v521
        // Predicated region
        $region45: #{tpu_custom_call.1} parent=39 // pred_check
          %p527 = pneg %p363
        $region46: #{tpu_custom_call.1} parent=39 // pred_check_branch
          %529 = sbr.rel (%p527) target = $region48
        $region47: #{tpu_custom_call.1} parent=39 // pred_region
          %v530 = vld [vmem:[#allocation2] sm:$0x3]
          %v531 = vld [vmem:[#allocation3] sm:$0x1]
          %533 = vset.pattern.permute.xlu0 0
          %534 = vperm.xlu0 %533, %v531
          %v535 = vpop.permute.xlu0 %534
          %v537 = vperm.slane %v535, 0
          %v538 = vadd.f32 %v530, %v537
          %539 = vst.msk [vmem:[%s334] sm:$0x3] %vm525, %v538
          %v540 = vmax.f32 %v538, 0.0
          %v541 = vand.u32 2147483647, %v538
          %v542 = vsub.f32 0.0, %v541
          %v543 = vmul.f32 %v542, 1.442695
          %v544 = vpow.pop %v543
          %v545 = vadd.f32 %v544, 1.0
          %v546 = vlog2.pop %v545
          %v547 = vmul.f32 %v546, 0.6931472
          %v548 = vadd.f32 %v540, %v547
          %549 = vst.msk [vmem:[%s327] sm:$0x3] %vm525, %v548
        $region48: #{tpu_custom_call.1} parent=39 // pred_fallthru
          _
        %s550 = sand.u32 %s182, 1
        %s551 = scalar_lea.sflag [#allocation5], %s550
        %s552 = sand.u32 %s182, 1
        %s553 = smul.addr %s552, 2
        %s554 = scalar_lea.vmem [#allocation4], %s553
        %s555 = sand.u32 %s210, 1
        %s556 = scalar_lea.sflag [#allocation7], %s555
        %s557 = sand.u32 %s210, 1
        %s558 = smul.addr %s557, 2
        %s559 = scalar_lea.vmem [#allocation6], %s558
        // Predicated region
        $region49: #{tpu_custom_call.1} parent=39 // pred_check
          %p560 = pneg %p192
        $region50: #{tpu_custom_call.1} parent=39 // pred_check_branch
          %562 = sbr.rel (%p560) target = $region52
        $region51: #{tpu_custom_call.1} parent=39 // pred_region
          %s563 = smul.u32 2, %s32
          %565 = vsyncadd %s551, 0
          %s566 = smul.addr %s31, 2
          %s567 = sadd.s32 %s563, %s566
          %s568 = scalar_lea.hbm %s5, %s567
          %s570 = sshll.u32 %s554, 4
          %s571 = int_to_ptr.vmem [resolvable:$true] %s570
          %s572 = sshll.u32 %s568, 4
          %s573 = int_to_ptr.hbm [resolvable:$true] %s572
          %575 = dma.vmem_to_hbm [thread:$0]  %s571, 32, %s573, %s551
        $region52: #{tpu_custom_call.1} parent=39 // pred_fallthru
          _
        // Predicated region
        $region53: #{tpu_custom_call.1} parent=39 // pred_check
          %p576 = pneg %p220
        $region54: #{tpu_custom_call.1} parent=39 // pred_check_branch
          %578 = sbr.rel (%p576) target = $region56
        $region55: #{tpu_custom_call.1} parent=39 // pred_region
          %s579 = smul.u32 2, %s32
          %581 = vsyncadd %s556, 0
          %s582 = smul.addr %s31, 2
          %s583 = sadd.s32 %s579, %s582
          %s584 = scalar_lea.hbm %s6, %s583
          %s586 = sshll.u32 %s559, 4
          %s587 = int_to_ptr.vmem [resolvable:$true] %s586
          %s588 = sshll.u32 %s584, 4
          %s589 = int_to_ptr.hbm [resolvable:$true] %s588
          %591 = dma.vmem_to_hbm [thread:$0]  %s587, 32, %s589, %s556
        $region56: #{tpu_custom_call.1} parent=39 // pred_fallthru
          _
      $region40: #{tpu_custom_call.1} parent=5 // pred_fallthru
        _
      %p592 = scmp.le.s32.totalorder 2, %s21
      // Predicated region
      $region57: #{tpu_custom_call.1} parent=5 // pred_check
        %p593 = pneg %p592
      $region58: #{tpu_custom_call.1} parent=5 // pred_check_branch
        %595 = sbr.rel (%p593) target = $region60
      $region59: #{tpu_custom_call.1} parent=5 // pred_region
        %s596 = ssub.s32 %s21, 2
        // Predicated region
        $region61: #{tpu_custom_call.1} parent=59 // pred_check
          %p597 = pneg %p198
        $region62: #{tpu_custom_call.1} parent=59 // pred_check_branch
          %599 = sbr.rel (%p597) target = $region64
        $region63: #{tpu_custom_call.1} parent=59 // pred_region
          %s600 = sand.u32 %s183, 1
          %s601 = scalar_lea.sflag [#allocation5], %s600
          %s602 = sand.u32 %s183, 1
          %s603 = smul.addr %s602, 2
          %s604 = scalar_lea.vmem [#allocation4], %s603
          %606 = dma.done %s601, 32
        $region64: #{tpu_custom_call.1} parent=59 // pred_fallthru
          _
        // Predicated region
        $region65: #{tpu_custom_call.1} parent=59 // pred_check
          %p607 = pneg %p226
        $region66: #{tpu_custom_call.1} parent=59 // pred_check_branch
          %609 = sbr.rel (%p607) target = $region68
        $region67: #{tpu_custom_call.1} parent=59 // pred_region
          %s610 = sand.u32 %s211, 1
          %s611 = scalar_lea.sflag [#allocation7], %s610
          %s612 = sand.u32 %s211, 1
          %s613 = smul.addr %s612, 2
          %s614 = scalar_lea.vmem [#allocation6], %s613
          %616 = dma.done %s611, 32
        $region68: #{tpu_custom_call.1} parent=59 // pred_fallthru
          _
      $region60: #{tpu_custom_call.1} parent=5 // pred_fallthru
        _
    $region6: #{tpu_custom_call.1} parent=1 // loop_footer
      %s25 = sadd.s32 1, %s21
    $region7: #{tpu_custom_call.1} parent=1 // loop_footer_branch
      %20 = sbr.rel target = $region3
    $region8: #{tpu_custom_call.1} parent=1 // loop_exit
      _
    %617 = vsyncpa [#allocation5], 1
    %s618 = scalar_lea.sflag [#allocation5], 1
    %619 = vsyncpa %s618, 1
    %620 = vsyncpa [#allocation7], 1
    %s621 = scalar_lea.sflag [#allocation7], 1
    %622 = vsyncpa %s621, 1

</llo_original>
